<compile_context>
chip_gen: v7x
topology: tpu7x:2x2x1
jax: 0.10.0
libtpu: 0.0.40
codegen_flags: <defaults>
</compile_context>

<pallas_src>
import math

import jax
import jax.numpy as jnp
from jax.experimental import pallas as pl
from jax.experimental.pallas import tpu as pltpu

LANES = 128        # vreg lane width
SLAB_ROWS = 512    # in-kernel reduction slab (bounds live f32 intermediates)
COL_CAP = 8192     # preferred upper bound when growing the zero-copy column dim
MAX_COLS = 65536   # hard bound on the zero-copy column dim


def _device_params():
    """(num_tensorcores, per-input tile bytes, input buffer depth) for this chip."""
    kind = ""
    try:
        dev = jax.devices()[0]
        if dev.platform == "tpu":
            kind = dev.device_kind.lower()
    except Exception:
        pass
    single_core = any(t in kind for t in ("v5 lite", "v5e", "v6 lite", "v6e"))
    ncores = 1 if (single_core or not kind) else 2
    is_v5e = ("v5 lite" in kind) or ("v5e" in kind)
    # ~2 MiB DMA chunks on v5e (slow HBM, small default scoped VMEM), ~4 MiB elsewhere.
    tile_bytes = (2 << 20) if is_v5e else (4 << 20)
    # Deeper input buffering only where steps are short (dual-core = v7x-class).
    nbuf = 3 if ncores > 1 else 2
    return ncores, tile_bytes, nbuf


def _choose_view(shape, n):
    """Pick a zero-copy 2-D (rows, cols) view of an array with `shape`/`n` elems."""
    if n % LANES == 0:
        return n // LANES, LANES
    cols = 1
    for d in reversed(shape):
        if cols != 1 and cols * d > COL_CAP:
            break
        cols *= d
    if cols <= MAX_COLS:
        return n // cols, cols
    # Single huge unaligned trailing dim: look for any divisor of n that gives a
    # reasonable zero-copy row length.
    for c in range(COL_CAP, LANES - 1, -1):
        if n % c == 0:
            return n // c, c
    return None


def _input_spec(block, index_map, nbuf):
    if nbuf > 2 and hasattr(pl, "Buffered"):
        try:
            return pl.BlockSpec(block, index_map, pipeline_mode=pl.Buffered(nbuf))
        except TypeError:
            pass
    return pl.BlockSpec(block, index_map)


def _make_kernel(*, tile_r, cols, slab, rows, nb_half, needs_mask,
                 first_partial, use_reshape_reduce):
    n_slabs = tile_r // slab

    def kernel(p_ref, t_ref, o_ref, acc_ref):
        c = pl.program_id(0)   # TensorCore half ("parallel")
        i = pl.program_id(1)   # reduction step ("arbitrary")

        @pl.when(i == 0)
        def _():
            acc_ref[...] = jnp.zeros_like(acc_ref)

        # Unclamped global block index. The DMA index_map clamps the duplicate
        # block (odd nblocks with 2 cores); the mask below must use the
        # UNCLAMPED index so that duplicate contributions are fully zeroed.
        b = c * nb_half + i

        def reduce_rows(sq):
            if use_reshape_reduce:
                # Pure VPU adds into a vreg-shaped partial.
                return jnp.sum(sq.reshape(slab // 8, 8, cols), axis=0)
            return jnp.sum(sq, axis=0, keepdims=True)

        def step(s, masked):
            r0 = s * slab
            if not isinstance(s, int) and slab % 8 == 0:
                r0 = pl.multiple_of(r0, 8)
            p = p_ref[pl.ds(r0, slab), :].astype(jnp.float32)
            t = t_ref[pl.ds(r0, slab), :].astype(jnp.float32)
            d = p - t
            sq = d * d
            if masked:
                rid = (b * tile_r + s * slab
                       + jax.lax.broadcasted_iota(jnp.int32, (slab, 1), 0))
                sq = jnp.where(rid < rows, sq, 0.0)
            acc_ref[...] += reduce_rows(sq)

        def accumulate(masked):
            if n_slabs == 1:
                step(0, masked)
            else:
                def body(s, carry):
                    step(s, masked)
                    return carry
                jax.lax.fori_loop(0, n_slabs, body, 0, unroll=True)

        if needs_mask:
            # Only edge/duplicate blocks pay for the mask; interior blocks take
            # the unmasked fast path.
            @pl.when(b >= first_partial)
            def _():
                accumulate(True)

            @pl.when(b < first_partial)
            def _():
                accumulate(False)
        else:
            accumulate(False)

        @pl.when(i == pl.num_programs(1) - 1)
        def _():
            o_ref[0, 0] = jnp.sum(acc_ref[...])

    return kernel


def _l2_sum_2d(p2, t2, *, tile_bytes, ncores, nbuf):
    """sum((p2 - t2)^2) over a 2-D (rows, cols) view via a streaming-reduce kernel."""
    rows, cols = p2.shape
    p_item = jnp.dtype(p2.dtype).itemsize
    t_item = jnp.dtype(t2.dtype).itemsize
    itemsize = max(p_item, t_item)
    cols_pad = pl.cdiv(cols, LANES) * LANES
    bytes_per_row = cols_pad * itemsize

    # Block row count: multiple of 8 (or the full row dim for tiny inputs),
    # a multiple of SLAB_ROWS once it exceeds SLAB_ROWS, sized so each input
    # tile stays ~tile_bytes regardless of dtype.
    r8 = rows if rows < 8 else pl.cdiv(rows, 8) * 8
    r_block = r8 if r8 <= SLAB_ROWS else pl.cdiv(rows, SLAB_ROWS) * SLAB_ROWS
    budget_rows = max(8, (tile_bytes // bytes_per_row) // 8 * 8)
    if budget_rows > SLAB_ROWS:
        budget_rows = (budget_rows // SLAB_ROWS) * SLAB_ROWS
    tile_r = min(budget_rows, r_block)
    slab = SLAB_ROWS if tile_r >= SLAB_ROWS else tile_r

    nblocks = pl.cdiv(rows, tile_r)
    outer = ncores if (ncores > 1 and nblocks >= 2) else 1
    nb_half = pl.cdiv(nblocks, outer)
    needs_mask = (outer * nb_half * tile_r) != rows
    first_partial = rows // tile_r          # first block index that needs masking
    use_reshape_reduce = (cols == LANES and slab % 8 == 0)
    acc_rows = 8 if use_reshape_reduce else 1

    def in_map(c, i):
        b = c * nb_half + i
        if outer > 1:
            # The second half may overrun by one block when nblocks is odd;
            # clamp the DMA to a valid block (its contribution is masked out).
            b = jnp.minimum(b, nblocks - 1)
        return (b, 0)

    kernel = _make_kernel(tile_r=tile_r, cols=cols, slab=slab, rows=rows,
                          nb_half=nb_half, needs_mask=needs_mask,
                          first_partial=first_partial,
                          use_reshape_reduce=use_reshape_reduce)

    in_block = (tile_r, cols)
    in_buf_bytes = nbuf * tile_r * cols_pad * (p_item + t_item)
    vmem_limit = max(32 << 20, int(in_buf_bytes) + (16 << 20))

    partials = pl.pallas_call(
        kernel,
        out_shape=jax.ShapeDtypeStruct((outer, 1), jnp.float32),
        grid_spec=pltpu.PrefetchScalarGridSpec(
            num_scalar_prefetch=0,
            grid=(outer, nb_half),
            in_specs=[
                _input_spec(in_block, in_map, nbuf),
                _input_spec(in_block, in_map, nbuf),
            ],
            out_specs=pl.BlockSpec((1, 1), lambda c, i: (c, 0),
                                   memory_space=pltpu.SMEM),
            scratch_shapes=[pltpu.VMEM((acc_rows, cols), jnp.float32)],
        ),
        compiler_params=pltpu.CompilerParams(
            dimension_semantics=("parallel", "arbitrary"),
            vmem_limit_bytes=vmem_limit),
        cost_estimate=pl.CostEstimate(
            flops=3 * rows * cols,
            transcendentals=0,
            bytes_accessed=rows * cols * (p_item + t_item)),
    )(p2, t2)
    return jnp.sum(partials)


def l2_loss(prediction, target):
    """sum((prediction - target)**2), i.e. torch.nn.MSELoss(reduction='sum')."""
    assert prediction.shape == target.shape, "MSELoss requires matching shapes"
    out_dtype = jnp.promote_types(prediction.dtype, target.dtype)
    n = math.prod(prediction.shape)
    if n == 0:
        return jnp.zeros((), out_dtype)

    ncores, tile_bytes, nbuf = _device_params()
    view = _choose_view(prediction.shape, n)
    tail = jnp.float32(0.0)

    if view is None:
        # TODO(synk): no zero-copy 2-D view for this shape (huge unaligned
        # trailing dim with no usable divisor); fall back to copying the
        # lane-aligned prefix + a tiny JAX tail.
        pf = prediction.reshape(-1)
        tf = target.reshape(-1)
        n_main = (n // LANES) * LANES
        p2 = jax.lax.slice(pf, (0,), (n_main,)).reshape(n_main // LANES, LANES)
        t2 = jax.lax.slice(tf, (0,), (n_main,)).reshape(n_main // LANES, LANES)
        tp = jax.lax.slice(pf, (n_main,), (n,)).astype(jnp.float32)
        tt = jax.lax.slice(tf, (n_main,), (n,)).astype(jnp.float32)
        tail = jnp.sum((tp - tt) ** 2)
    else:
        rows, cols = view
        p2 = prediction.reshape(rows, cols)   # zero-copy: no extra HBM traffic
        t2 = target.reshape(rows, cols)

    total = _l2_sum_2d(p2, t2, tile_bytes=tile_bytes, ncores=ncores, nbuf=nbuf) + tail
    # Matches input-dtype semantics of the reference (may downcast the f32 sum).
    return total.astype(out_dtype)


if __name__ == "__main__":
    key = jax.random.PRNGKey(0)
    kp, kt = jax.random.split(key)

    loss_fn = jax.jit(l2_loss)

    # Small NCHW prediction/target consistent with the PyTorch module (aligned path).
    prediction = jax.random.normal(kp, (2, 4, 16, 16), dtype=jnp.float32)
    target = jax.random.normal(kt, (2, 4, 16, 16), dtype=jnp.float32)
    loss = jax.block_until_ready(loss_fn(prediction, target))
    ref = jnp.sum((prediction - target) ** 2)
    assert jnp.allclose(loss, ref, rtol=1e-5, atol=1e-5), (loss, ref)

    # Multi-block / masked / megacore path (rows > one tile, lane-aligned count).
    kp2, kt2 = jax.random.split(jax.random.PRNGKey(1))
    p_big = jax.random.normal(kp2, (2, 3, 500, 400), dtype=jnp.float32)
    t_big = jax.random.normal(kt2, (2, 3, 500, 400), dtype=jnp.float32)
    loss_big = jax.block_until_ready(loss_fn(p_big, t_big))
    ref_big = jnp.sum((p_big - t_big) ** 2)
    assert jnp.allclose(loss_big, ref_big, rtol=2e-4, atol=1e-2), (loss_big, ref_big)

    # Unaligned element count (n % 128 != 0): zero-copy suffix-product view.
    kp3, kt3 = jax.random.split(jax.random.PRNGKey(2))
    p_un = jax.random.normal(kp3, (3, 5, 100, 77), dtype=jnp.float32)
    t_un = jax.random.normal(kt3, (3, 5, 100, 77), dtype=jnp.float32)
    loss_un = jax.block_until_ready(loss_fn(p_un, t_un))
    ref_un = jnp.sum((p_un - t_un) ** 2)
    assert jnp.allclose(loss_un, ref_un, rtol=2e-4, atol=1e-2), (loss_un, ref_un)

    # Tiny odd shape.
    kp4, kt4 = jax.random.split(jax.random.PRNGKey(3))
    p_odd = jax.random.normal(kp4, (2, 3, 7, 5), dtype=jnp.float32)
    t_odd = jax.random.normal(kt4, (2, 3, 7, 5), dtype=jnp.float32)
    loss_odd = jax.block_until_ready(loss_fn(p_odd, t_odd))
    ref_odd = jnp.sum((p_odd - t_odd) ** 2)
    assert jnp.allclose(loss_odd, ref_odd, rtol=1e-5, atol=1e-5), (loss_odd, ref_odd)

    print("KERNEL_OK")
</pallas_src>

<mosaic_0001>
module attributes {stable_mosaic.version = 11 : i64} {
  func.func @kernel(%arg0: i32, %arg1: i32, %arg2: memref<16x128xf32, #tpu.memory_space<vmem>>, %arg3: memref<16x128xf32, #tpu.memory_space<vmem>>, %arg4: memref<1x1xf32, #tpu.memory_space<smem>>, %arg5: memref<8x128xf32, #tpu.memory_space<vmem>>) attributes {dimension_semantics = [#tpu.dimension_semantics<parallel>, #tpu.dimension_semantics<arbitrary>], iteration_bounds = array<i64: 1, 1>, scalar_prefetch = 0 : i64, scratch_operands = 1 : i64, tpu.core_type = #tpu.core_type<tc>, window_params = [{transform_indices = @transform_0, window_bounds = array<i64: 16, 128>}, {transform_indices = @transform_1, window_bounds = array<i64: 16, 128>}, {transform_indices = @transform_2, window_bounds = array<i64: 1, 1>}]} {
    %c0_i32 = arith.constant 0 : i32
    %0 = arith.cmpi eq, %arg1, %c0_i32 : i32
    %1 = arith.extui %0 : i1 to i32
    %c0_i32_0 = arith.constant 0 : i32
    %2 = arith.cmpi ne, %1, %c0_i32_0 : i32
    scf.if %2 {
      %cst_10 = arith.constant 0.000000e+00 : f32
      %15 = vector.broadcast %cst_10 : f32 to vector<8x128xf32>
      %c0_11 = arith.constant 0 : index
      %c0_12 = arith.constant 0 : index
      %16 = vector.load %arg5[%c0_11, %c0_12] : memref<8x128xf32, #tpu.memory_space<vmem>>, vector<8x128xf32>
      tpu.vector_store %arg5[%c0_11, %c0_12], %15 {strides = array<i32>} : memref<8x128xf32, #tpu.memory_space<vmem>>, vector<8x128xf32>,
    } else {
    }
    %c0 = arith.constant 0 : index
    %c0_1 = arith.constant 0 : index
    %3 = vector.load %arg2[%c0, %c0_1] : memref<16x128xf32, #tpu.memory_space<vmem>>, vector<16x128xf32>
    %c0_2 = arith.constant 0 : index
    %c0_3 = arith.constant 0 : index
    %4 = vector.load %arg3[%c0_2, %c0_3] : memref<16x128xf32, #tpu.memory_space<vmem>>, vector<16x128xf32>
    %5 = arith.subf %3, %4 : vector<16x128xf32>
    %6 = arith.mulf %5, %5 : vector<16x128xf32>
    %c0_4 = arith.constant 0 : index
    %c0_5 = arith.constant 0 : index
    %7 = vector.load %arg5[%c0_4, %c0_5] : memref<8x128xf32, #tpu.memory_space<vmem>>, vector<8x128xf32>
    %8 = vector.shape_cast %6 : vector<16x128xf32> to vector<2x8x128xf32>
    %cst = arith.constant dense<0.000000e+00> : vector<8x128xf32>
    %9 = vector.multi_reduction <add>, %8, %cst [0] : vector<2x8x128xf32> to vector<8x128xf32>
    %10 = arith.addf %7, %9 : vector<8x128xf32>
    %c0_6 = arith.constant 0 : index
    %c0_7 = arith.constant 0 : index
    %11 = vector.load %arg5[%c0_6, %c0_7] : memref<8x128xf32, #tpu.memory_space<vmem>>, vector<8x128xf32>
    tpu.vector_store %arg5[%c0_6, %c0_7], %10 {strides = array<i32>} : memref<8x128xf32, #tpu.memory_space<vmem>>, vector<8x128xf32>,
    %c0_i32_8 = arith.constant 0 : i32
    %12 = arith.cmpi eq, %arg1, %c0_i32_8 : i32
    %13 = arith.extui %12 : i1 to i32
    %c0_i32_9 = arith.constant 0 : i32
    %14 = arith.cmpi ne, %13, %c0_i32_9 : i32
    scf.if %14 {
      %c0_10 = arith.constant 0 : index
      %c0_11 = arith.constant 0 : index
      %15 = vector.load %arg5[%c0_10, %c0_11] : memref<8x128xf32, #tpu.memory_space<vmem>>, vector<8x128xf32>
      %16 = vector.shape_cast %15 : vector<8x128xf32> to vector<1x8x128xf32>
      %cst_12 = arith.constant dense<0.000000e+00> : vector<1xf32>
      %17 = vector.multi_reduction <add>, %16, %cst_12 [1, 2] : vector<1x8x128xf32> to vector<1xf32>
      %18 = vector.shape_cast %17 : vector<1xf32> to vector<1x1x1xf32>
      %19 = vector.extract %18[0, 0, 0] : f32 from vector<1x1x1xf32>
      %c0_13 = arith.constant 0 : index
      %c0_14 = arith.constant 0 : index
      %20 = memref.load %arg4[%c0_13, %c0_14] : memref<1x1xf32, #tpu.memory_space<smem>>
      memref.store %19, %arg4[%c0_13, %c0_14] : memref<1x1xf32, #tpu.memory_space<smem>>
    } else {
    }
    return
  }
  func.func @transform_0(%arg0: i32, %arg1: i32) -> (i32, i32) {
    %c1_i32 = arith.constant 1 : i32
    %0 = arith.muli %arg0, %c1_i32 : i32
    %1 = arith.addi %0, %arg1 : i32
    %c0_i32 = arith.constant 0 : i32
    %c0_i32_0 = arith.constant 0 : i32
    return %1, %c0_i32 : i32, i32
  }
  func.func @transform_1(%arg0: i32, %arg1: i32) -> (i32, i32) {
    %c1_i32 = arith.constant 1 : i32
    %0 = arith.muli %arg0, %c1_i32 : i32
    %1 = arith.addi %0, %arg1 : i32
    %c0_i32 = arith.constant 0 : i32
    %c0_i32_0 = arith.constant 0 : i32
    return %1, %c0_i32 : i32, i32
  }
  func.func @transform_2(%arg0: i32, %arg1: i32) -> (i32, i32) {
    %c0_i32 = arith.constant 0 : i32
    %c0_i32_0 = arith.constant 0 : i32
    return %arg0, %c0_i32 : i32, i32
  }
}

</mosaic_0001>

<llo_original>
// kernel: l2_loss.1
$region0: #{l2_loss.1}
  #allocation0 [shape = 'u32[]', space=smem, size = 0x4, offset = 0x4, fixed_abs, tag = 'smem constant byte address 0x4 - core index']
  #allocation1 [shape = 'u32[144,128]{1,0:T(1,128)}', space=vmem, size = 0x12000, scoped, tag = 'internal scratch']
  #allocation2 [shape = 'f32[8,128]{1,0:T(8,128)}', space=vmem, size = 0x1000, scoped, tag = 'scratch operand']
  %s0 = inlined_call_operand.vmem [shape: f32[16,128], index: 0, kind: input, shape index: {}]
  %s1 = inlined_call_operand.vmem [shape: f32[16,128], index: 1, kind: input, shape index: {}]
  %s2 = inlined_call_operand.hbm [shape: f32[1,1], index: 2, kind: output, shape index: {}]
  %s3 = sld [smem:[#allocation0]]
  $region26: #{l2_loss.1} parent=0
    _
  %s5 = ssub.s32 1, %s3
  %s6 = scalar_select 0, %s5, %s3
  $region1: #{l2_loss.1} parent=0
    #allocation3 [shape = 'u8[512]{0}', space=smem, size = 0x200, scoped, tag = 'output window, operand 0, single buffered']
    #allocation4 [shape = 's32[1]{0}', space=sflag, size = 0x4, scoped, tag = 'scoped memory for l2_loss.1']
    %7 = vsyncpa [#allocation4], 0
    // Predicated region
    $region2: #{l2_loss.1} parent=1 // pred_check
      _
    $region3: #{l2_loss.1} parent=1 // pred_check_branch
      %9 = sbr.rel (0) target = $region5
    $region4: #{l2_loss.1} parent=1 // pred_region
      %s10 = sadd.s32 0, 0
      %s11 = smul.u32 2, %s10
      %p12 = scmp.lt.s32.totalorder %s11, 1
      %s13 = scalar_select %p12, %s11, 1
      %s14 = smul.addr %s13, 8
      %s15 = scalar_lea.vmem %s0, %s14
      %s16 = sadd.s32 0, 0
      %s17 = smul.u32 2, %s16
    $region5: #{l2_loss.1} parent=1 // pred_fallthru
      _
    // Predicated region
    $region6: #{l2_loss.1} parent=1 // pred_check
      _
    $region7: #{l2_loss.1} parent=1 // pred_check_branch
      %19 = sbr.rel (0) target = $region9
    $region8: #{l2_loss.1} parent=1 // pred_region
      %s20 = sadd.s32 0, 0
      %s21 = smul.u32 2, %s20
      %p22 = scmp.lt.s32.totalorder %s21, 1
      %s23 = scalar_select %p22, %s21, 1
      %s24 = smul.addr %s23, 8
      %s25 = scalar_lea.vmem %s1, %s24
      %s26 = sadd.s32 0, 0
      %s27 = smul.u32 2, %s26
    $region9: #{l2_loss.1} parent=1 // pred_fallthru
      _
    %s28 = sadd.s32 0, 0
    %s29 = smul.u32 2, %s28
    %p30 = scmp.lt.s32.totalorder %s29, 1
    %s31 = scalar_select %p30, %s29, 1
    %s32 = smul.addr %s31, 8
    %s33 = scalar_lea.vmem %s0, %s32
    %s34 = sadd.s32 0, 0
    %s35 = smul.u32 2, %s34
    %p36 = scmp.lt.s32.totalorder %s35, 1
    %s37 = scalar_select %p36, %s35, 1
    %s38 = smul.addr %s37, 8
    %s39 = scalar_lea.vmem %s1, %s38
    %s40 = sadd.s32 0, 0
    %s41 = smul.u32 2, %s40
    %p42 = scmp.lt.s32.totalorder %s41, 1
    %s43 = scalar_select %p42, %s41, 1
    %s44 = smul.addr %s43, 8
    %s45 = scalar_lea.vmem %s0, %s44
    %s46 = sadd.s32 0, 0
    %s47 = smul.u32 2, %s46
    %s48 = sadd.s32 0, 0
    %s49 = smul.u32 2, %s48
    %p50 = scmp.lt.s32.totalorder %s49, 1
    %s51 = scalar_select %p50, %s49, 1
    %s52 = smul.addr %s51, 8
    %s53 = scalar_lea.vmem %s1, %s52
    %s54 = sadd.s32 0, 0
    %s55 = smul.u32 2, %s54
    %p56 = scmp.eq.s32.totalorder 0, 0
    // Predicated region
    $region10: #{l2_loss.1} parent=1 // pred_check
      %p57 = pneg %p56
    $region11: #{l2_loss.1} parent=1 // pred_check_branch
      %59 = sbr.rel (%p57) target = $region13
    $region12: #{l2_loss.1} parent=1 // pred_region
      %60 = vst [vmem:[#allocation2] sm:$0xff] 0.0
    $region13: #{l2_loss.1} parent=1 // pred_fallthru
      _
    %v61 = vld [vmem:[%s45] sm:$0xff]
    %v62 = vld [vmem:[%s45 + $0x8] sm:$0xff]
    %v63 = vld [vmem:[%s53] sm:$0xff]
    %v64 = vld [vmem:[%s53 + $0x8] sm:$0xff]
    %v65 = vsub.f32 %v61, %v63
    %v66 = vsub.f32 %v62, %v64
    %v67 = vmul.f32 %v65, %v65
    %v68 = vmul.f32 %v66, %v66
    %v69 = vld [vmem:[#allocation2] sm:$0xff]
    %v70 = vadd.f32 %v67, %v68
    %v71 = vadd.f32 %v69, %v70
    %72 = vst [vmem:[#allocation2] sm:$0xff] %v71
    // Predicated region
    $region14: #{l2_loss.1} parent=1 // pred_check
      %p73 = pneg %p56
    $region15: #{l2_loss.1} parent=1 // pred_check_branch
      %75 = sbr.rel (%p73) target = $region17
    $region16: #{l2_loss.1} parent=1 // pred_region
      %v76 = vld [vmem:[#allocation2] sm:$0xff]
      %77 = vadd.xlane.f32.xlu0 %v76
      %v78 = vpop.xlane.xlu0 %77
      %v79 = vrot.slane %v78, 4
      %v80 = vadd.f32 %v78, %v79
      %v81 = vrot.slane %v80, 2
      %v82 = vadd.f32 %v80, %v81
      %v83 = vrot.slane %v82, 1
      %v84 = vadd.f32 %v82, %v83
      %s85 = vtos %v84
      %s86 = scalar_lea.smem [#allocation3], 0
      %87 = sst [smem:[%s86]] %s85
    $region17: #{l2_loss.1} parent=1 // pred_fallthru
      _
    // Predicated region
    $region18: #{l2_loss.1} parent=1 // pred_check
      _
    $region19: #{l2_loss.1} parent=1 // pred_check_branch
      %89 = sbr.rel (0) target = $region21
    $region20: #{l2_loss.1} parent=1 // pred_region
      %s91 = ssub.s32 16, 16
      %92 = vsyncadd [#allocation4], %s91
      %95 = dma.smem_to_hbm [#allocation3], 16, %s2, [#allocation4]
    $region21: #{l2_loss.1} parent=1 // pred_fallthru
      _
    // Predicated region
    $region22: #{l2_loss.1} parent=1 // pred_check
      _
    $region23: #{l2_loss.1} parent=1 // pred_check_branch
      %97 = sbr.rel (0) target = $region25
    $region24: #{l2_loss.1} parent=1 // pred_region
      %98 = dma.done [#allocation4], 16
    $region25: #{l2_loss.1} parent=1 // pred_fallthru
      _
    %99 = sfence
    %100 = vsyncpa [#allocation4], 1

</llo_original>
